<compile_context>
chip_gen: v7x
topology: tpu7x:2x2x1
jax: 0.10.0
libtpu: 0.0.40
codegen_flags: <defaults>
</compile_context>

<pallas_src>
import jax
import jax.numpy as jnp
from jax.experimental import pallas as pl
from jax.experimental.pallas import tpu as pltpu

THRESHOLD = 1.0  # snn.Leaky default threshold
BETA = 0.99      # CorticalLayer default (unused at runtime: beta * 0 == 0)


# ----------------------------- Pallas kernel --------------------------------
def _output_area_kernel(x_ref, wg_ref, bg_ref, ws_ref, bs_ref, spk_ref):
    """Fused OutputArea forward (granular -> superficial), lane-major.

    x_ref:   (layer_size, block_b)   input block, batch on lanes
    wg_ref:  (layer_size, layer_size) granular weight (pre-sliced, (out,in))
    bg_ref:  (layer_size, 1)          granular bias
    ws_ref:  (out_f, layer_size)      superficial weight ((out,in))
    bs_ref:  (out_f, 1)               superficial bias
    spk_ref: (out_f, block_b)         superficial spikes (0./1.)
    """
    x = x_ref[...]

    # granular: Leaky with mem ≡ 0  ->  mem_new = Wg @ x + bg,  spk = (mem_new > thr)
    g_y = jnp.dot(wg_ref[...], x, preferred_element_type=jnp.float32) + bg_ref[...]
    # spikes are exactly 0/1 -> cast to the weight dtype so the second matmul
    # runs on the MXU's native datapath when weights are bf16 (v6e/v7x).
    g_spk = (g_y > THRESHOLD).astype(ws_ref.dtype)

    # superficial
    s_y = jnp.dot(ws_ref[...], g_spk, preferred_element_type=jnp.float32) + bs_ref[...]
    spk_ref[...] = (s_y > THRESHOLD).astype(spk_ref.dtype)


def output_area_forward(kparams, x, target=None, *, block_b=256):
    """OutputArea.forward for a batch of independent forwards.

    `target` only feeds the (dead) custom_loss path in the original module, so
    it is accepted for interface fidelity but unused.  Each row of `x` is an
    independent forward pass (module state never updates), so the whole batch
    is processed in one gridded pallas_call.
    """
    del target  # dead code in the original module's forward
    B, layer_size = x.shape
    wg, bg, ws, bs = kparams["wg"], kparams["bg"], kparams["ws"], kparams["bs"]
    assert wg.shape == (layer_size, layer_size)
    out_f = ws.shape[0]

    # Wrapper-side layout plumbing: batch on the lane (last) axis.
    xt = x.T  # (layer_size, B)
    n_blk = pl.cdiv(B, block_b)
    Bp = n_blk * block_b
    if Bp != B:
        xt = jnp.pad(xt, ((0, 0), (0, Bp - B)))

    out_fb = pl.pallas_call(
        _output_area_kernel,
        out_shape=jax.ShapeDtypeStruct((out_f, Bp), jnp.float32),
        grid=(n_blk,),
        in_specs=[
            pl.BlockSpec((layer_size, block_b), lambda i: (0, i)),  # x (pipelined)
            pl.BlockSpec((layer_size, layer_size), lambda i: (0, 0)),  # Wg resident
            pl.BlockSpec((layer_size, 1), lambda i: (0, 0)),            # bg resident
            pl.BlockSpec((out_f, layer_size), lambda i: (0, 0)),        # Ws resident
            pl.BlockSpec((out_f, 1), lambda i: (0, 0)),                 # bs resident
        ],
        out_specs=pl.BlockSpec((out_f, block_b), lambda i: (0, i)),
        compiler_params=pltpu.CompilerParams(
            dimension_semantics=("parallel",)),  # v7x: split batch over 2 TCs
    )(xt, wg, bg, ws, bs)

    return out_fb[:, :B].T  # (B, out_f)


# --------------------------- parameter creation ------------------------------
def _init_linear(key, in_f, out_f):
    """torch.nn.Linear default init: W (out_f, in_f), b (out_f,)
    ~ U(-1/sqrt(in_f), 1/sqrt(in_f))."""
    kw, kb = jax.random.split(key)
    bound = 1.0 / jnp.sqrt(jnp.float32(in_f))
    w = jax.random.uniform(kw, (out_f, in_f), jnp.float32, -bound, bound)
    b = jax.random.uniform(kb, (out_f,), jnp.float32, -bound, bound)
    return {"w": w, "b": b}


def init_output_area(key, layer_size, output_size):
    # The original module's (discarded) deep-layer call requires
    # output_size == layer_size; make that explicit.
    assert output_size == layer_size, (
        "OutputArea's deep layer call requires output_size == layer_size")
    kg, ks, kd = jax.random.split(key, 3)
    return {
        "granular": _init_linear(kg, layer_size * 2, layer_size),
        "superficial": _init_linear(ks, layer_size, output_size),
        # deep layer params kept for module fidelity; its forward output is
        # discarded by OutputArea.forward, so it is never computed.
        "deep": _init_linear(kd, layer_size, layer_size),
    }


def prepare_kernel_params(params, layer_size, dtype=jnp.float32):
    """Bake the kernel-side operand layout once (not per call):
      * granular W pre-sliced to its live half (deep.spk ≡ 0 -> the second
        half of its input columns never contributes, never moved HBM->VMEM),
      * biases reshaped to (out_f, 1) to broadcast along the batch-lane axis,
      * optional bf16 weight cast for native-MXU operands on v6e/v7x.
    """
    g, s = params["granular"], params["superficial"]
    return {
        "wg": g["w"][:, :layer_size].astype(dtype),     # (layer_size, layer_size)
        "bg": g["b"].reshape(-1, 1).astype(jnp.float32),
        "ws": s["w"].astype(dtype),                     # (out_f, layer_size)
        "bs": s["b"].reshape(-1, 1).astype(jnp.float32),
    }


# ----------------------------------- main ------------------------------------
if __name__ == "__main__":
    layer_size = 32
    output_size = 32
    batch = 512  # many independent forwards folded into one call

    key = jax.random.PRNGKey(0)
    kp, kx, kt = jax.random.split(key, 3)

    params = init_output_area(kp, layer_size, output_size)
    # f32 for exact parity; use dtype=jnp.bfloat16 on v6e/v7x after validation.
    kparams = prepare_kernel_params(params, layer_size, dtype=jnp.float32)

    x = jax.random.normal(kx, (batch, layer_size), jnp.float32)
    target = jax.nn.one_hot(jnp.argmax(jax.random.normal(kt, (10,))), 10)

    out = output_area_forward(kparams, x, target, block_b=256)
    out = jax.block_until_ready(out)

    assert out.shape == (batch, output_size)
    assert out.dtype == jnp.float32
    # spikes are exactly 0 or 1
    assert bool(jnp.all((out == 0.0) | (out == 1.0)))

    # Pure-JAX reference of the module forward (mem/spk stay at zero init).
    g, s = params["granular"], params["superficial"]
    gy = x @ g["w"][:, :layer_size].T + g["b"]
    gspk = (gy > THRESHOLD).astype(jnp.float32)
    sy = gspk @ s["w"].T + s["b"]
    ref = (sy > THRESHOLD).astype(jnp.float32)
    # Tolerate measure-zero threshold-boundary flips from f32 rounding-order
    # differences; a layout/transposition bug would mismatch ~50% of spikes.
    mismatch = float(jnp.mean((out != ref).astype(jnp.float32)))
    assert mismatch < 1e-3, f"spike mismatch fraction {mismatch}"

    print("KERNEL_OK")
</pallas_src>

<mosaic_0001>
module attributes {stable_mosaic.version = 11 : i64} {
  func.func @_output_area_kernel(%arg0: i32, %arg1: memref<32x256xf32, #tpu.memory_space<vmem>>, %arg2: memref<32x32xf32, #tpu.memory_space<vmem>>, %arg3: memref<32x1xf32, #tpu.memory_space<vmem>>, %arg4: memref<32x32xf32, #tpu.memory_space<vmem>>, %arg5: memref<32x1xf32, #tpu.memory_space<vmem>>, %arg6: memref<32x256xf32, #tpu.memory_space<vmem>>) attributes {dimension_semantics = [#tpu.dimension_semantics<parallel>], iteration_bounds = array<i64: 2>, scalar_prefetch = 0 : i64, scratch_operands = 0 : i64, tpu.core_type = #tpu.core_type<tc>, window_params = [{transform_indices = @transform_0, window_bounds = array<i64: 32, 256>}, {pipeline_mode = #tpu.pipeline_mode<synchronous>, transform_indices = @transform_1, window_bounds = array<i64: 32, 32>}, {pipeline_mode = #tpu.pipeline_mode<synchronous>, transform_indices = @transform_2, window_bounds = array<i64: 32, 1>}, {pipeline_mode = #tpu.pipeline_mode<synchronous>, transform_indices = @transform_3, window_bounds = array<i64: 32, 32>}, {pipeline_mode = #tpu.pipeline_mode<synchronous>, transform_indices = @transform_4, window_bounds = array<i64: 32, 1>}, {transform_indices = @transform_5, window_bounds = array<i64: 32, 256>}]} {
    %c0 = arith.constant 0 : index
    %c0_0 = arith.constant 0 : index
    %0 = vector.load %arg1[%c0, %c0_0] : memref<32x256xf32, #tpu.memory_space<vmem>>, vector<32x256xf32>
    %c0_1 = arith.constant 0 : index
    %c0_2 = arith.constant 0 : index
    %1 = vector.load %arg2[%c0_1, %c0_2] : memref<32x32xf32, #tpu.memory_space<vmem>>, vector<32x32xf32>
    %cst = arith.constant dense<0.000000e+00> : vector<32x256xf32>
    %2 = tpu.matmul %1, %0, %cst {dimension_numbers = #tpu.dot_dimension_numbers<[1], [0], [0], [1], [0, 0, 1, 1], [], []>} : vector<32x32xf32>, vector<32x256xf32>, vector<32x256xf32> -> vector<32x256xf32>
    %c0_3 = arith.constant 0 : index
    %c0_4 = arith.constant 0 : index
    %3 = vector.load %arg3[%c0_3, %c0_4] : memref<32x1xf32, #tpu.memory_space<vmem>>, vector<32x1xf32>
    %4 = vector.broadcast %3 : vector<32x1xf32> to vector<32x256xf32>
    %5 = arith.addf %2, %4 : vector<32x256xf32>
    %cst_5 = arith.constant 1.000000e+00 : f32
    %6 = vector.broadcast %cst_5 : f32 to vector<32x256xf32>
    %7 = arith.cmpf ogt, %5, %6 : vector<32x256xf32>
    %8 = arith.extui %7 : vector<32x256xi1> to vector<32x256xi32>
    %9 = arith.sitofp %8 : vector<32x256xi32> to vector<32x256xf32>
    %c0_6 = arith.constant 0 : index
    %c0_7 = arith.constant 0 : index
    %10 = vector.load %arg4[%c0_6, %c0_7] : memref<32x32xf32, #tpu.memory_space<vmem>>, vector<32x32xf32>
    %cst_8 = arith.constant dense<0.000000e+00> : vector<32x256xf32>
    %11 = tpu.matmul %10, %9, %cst_8 {dimension_numbers = #tpu.dot_dimension_numbers<[1], [0], [0], [1], [0, 0, 1, 1], [], []>} : vector<32x32xf32>, vector<32x256xf32>, vector<32x256xf32> -> vector<32x256xf32>
    %c0_9 = arith.constant 0 : index
    %c0_10 = arith.constant 0 : index
    %12 = vector.load %arg5[%c0_9, %c0_10] : memref<32x1xf32, #tpu.memory_space<vmem>>, vector<32x1xf32>
    %13 = vector.broadcast %12 : vector<32x1xf32> to vector<32x256xf32>
    %14 = arith.addf %11, %13 : vector<32x256xf32>
    %cst_11 = arith.constant 1.000000e+00 : f32
    %15 = vector.broadcast %cst_11 : f32 to vector<32x256xf32>
    %16 = arith.cmpf ogt, %14, %15 : vector<32x256xf32>
    %17 = arith.extui %16 : vector<32x256xi1> to vector<32x256xi32>
    %18 = arith.sitofp %17 : vector<32x256xi32> to vector<32x256xf32>
    %c0_12 = arith.constant 0 : index
    %c0_13 = arith.constant 0 : index
    %19 = vector.load %arg6[%c0_12, %c0_13] : memref<32x256xf32, #tpu.memory_space<vmem>>, vector<32x256xf32>
    tpu.vector_store %arg6[%c0_12, %c0_13], %18 {strides = array<i32>} : memref<32x256xf32, #tpu.memory_space<vmem>>, vector<32x256xf32>,
    return
  }
  func.func @transform_0(%arg0: i32) -> (i32, i32) {
    %c0_i32 = arith.constant 0 : i32
    %c0_i32_0 = arith.constant 0 : i32
    return %c0_i32, %arg0 : i32, i32
  }
  func.func @transform_1(%arg0: i32) -> (i32, i32) {
    %c0_i32 = arith.constant 0 : i32
    %c0_i32_0 = arith.constant 0 : i32
    %c0_i32_1 = arith.constant 0 : i32
    return %c0_i32, %c0_i32_0 : i32, i32
  }
  func.func @transform_2(%arg0: i32) -> (i32, i32) {
    %c0_i32 = arith.constant 0 : i32
    %c0_i32_0 = arith.constant 0 : i32
    %c0_i32_1 = arith.constant 0 : i32
    return %c0_i32, %c0_i32_0 : i32, i32
  }
  func.func @transform_3(%arg0: i32) -> (i32, i32) {
    %c0_i32 = arith.constant 0 : i32
    %c0_i32_0 = arith.constant 0 : i32
    %c0_i32_1 = arith.constant 0 : i32
    return %c0_i32, %c0_i32_0 : i32, i32
  }
  func.func @transform_4(%arg0: i32) -> (i32, i32) {
    %c0_i32 = arith.constant 0 : i32
    %c0_i32_0 = arith.constant 0 : i32
    %c0_i32_1 = arith.constant 0 : i32
    return %c0_i32, %c0_i32_0 : i32, i32
  }
  func.func @transform_5(%arg0: i32) -> (i32, i32) {
    %c0_i32 = arith.constant 0 : i32
    %c0_i32_0 = arith.constant 0 : i32
    return %c0_i32, %arg0 : i32, i32
  }
}

</mosaic_0001>

<llo_original>
// kernel: tpu_custom_call.1
$region0: #{tpu_custom_call.1}
  #allocation0 [shape = 'u32[]', space=smem, size = 0x4, offset = 0x4, fixed_abs, tag = 'smem constant byte address 0x4 - core index']
  #allocation1 [shape = 'u32[144,128]{1,0:T(1,128)}', space=vmem, size = 0x12000, scoped, tag = 'internal scratch']
  %s0 = inlined_call_operand.hbm [shape: f32[32,512], index: 0, kind: input, shape index: {}]
  %s1 = inlined_call_operand.vmem [shape: f32[32,32], index: 1, kind: input, shape index: {}]
  %s2 = inlined_call_operand.vmem [shape: f32[32,1], index: 2, kind: input, shape index: {}]
  %s3 = inlined_call_operand.vmem [shape: f32[32,32], index: 3, kind: input, shape index: {}]
  %s4 = inlined_call_operand.vmem [shape: f32[32,1], index: 4, kind: input, shape index: {}]
  %s5 = inlined_call_operand.hbm [shape: f32[32,512], index: 5, kind: output, shape index: {}]
  %s6 = sld [smem:[#allocation0]]
  $region57: #{tpu_custom_call.1} parent=0
    _
  %s8 = ssub.s32 1, %s6
  %s9 = scalar_select 0, %s8, %s6
  $region1: #{tpu_custom_call.1} parent=0
    #allocation2 [shape = 'u8[65536]{0}', space=vmem, size = 0x10000, scoped, tag = 'input window, operand 0']
    #allocation3 [shape = 's32[2]{0}', space=sflag, size = 0x8, scoped, tag = 'scoped memory for tpu_custom_call.1']
    #allocation4 [shape = 's32[2]{0}', space=sflag, size = 0x8, scoped, tag = 'scoped memory for tpu_custom_call.1']
    #allocation5 [shape = 'u8[65536]{0}', space=vmem, size = 0x10000, scoped, tag = 'output window, operand 0']
    %10 = vsyncpa [#allocation3], 0
    %s11 = scalar_lea.sflag [#allocation3], 1
    %12 = vsyncpa %s11, 0
    %13 = vsyncpa [#allocation4], 0
    %s14 = scalar_lea.sflag [#allocation4], 1
    %15 = vsyncpa %s14, 0
    loop: start=0, step=1, limit=4
    $region2: #{tpu_custom_call.1} parent=1 // loop_pre_header
      _
    $region3: #{tpu_custom_call.1} parent=1 // loop_header
      %s17 = sphi 0, %s21
      %p18 = scmp.ge.s32.totalorder %s17, 4
      %s27 = sphi 0, %s29
      %s30 = sphi 0, %s27
      %s31 = sphi 0, %s30
      %s47 = sphi 0, %s31
      %s51 = sphi 0, %s51
      %s53 = sphi 0, %s51
      %s54 = sphi 0, %s53
      %s68 = sphi 0, %s54
      %s72 = sphi 0, %s72
      %s74 = sphi 0, %s72
      %s75 = sphi 0, %s74
      %s89 = sphi 0, %s75
      %s93 = sphi 0, %s93
      %s95 = sphi 0, %s93
      %s96 = sphi 0, %s95
      %s110 = sphi 0, %s96
      %s114 = sphi 0, %s114
      %s116 = sphi 0, %s114
      %s117 = sphi 0, %s116
      %s131 = sphi 0, %s117
      %s137 = sphi 0, %s139
      %s140 = sphi 0, %s137
      %s141 = sphi 0, %s140
      %s157 = sphi 0, %s141
    $region4: #{tpu_custom_call.1} parent=1 // loop_header_branch
      %20 = sbr.rel (%p18) target = $region8
    $region5: #{tpu_custom_call.1} parent=1 // loop_body
      %s22 = ssub.s32 %s17, 1
      %s23 = ssub.s32 %s17, 2
      %s24 = sadd.s32 %s17, 1
      %s25 = ssub.s32 %s17, %s24
      %p26 = scmp.eq.s32.totalorder %s25, 0
      %s28 = sadd.s32 %s27, 1
      %s29 = scalar_select %p26, %s27, %s28
      %p32 = pneg %p26
      %p33 = scmp.eq.s32.totalorder %s17, 1
      %p34 = por %p32, %p33
      %p35 = scmp.ne.s32.totalorder %s27, %s30
      %p36 = scmp.eq.s32.totalorder %s17, 0
      %p37 = por %p35, %p36
      %p38 = scmp.ne.s32.totalorder %s27, %s30
      %p39 = scmp.eq.s32.totalorder %s22, 1
      %p40 = por %p38, %p39
      %p41 = scmp.ne.s32.totalorder %s30, %s31
      %p42 = scmp.eq.s32.totalorder %s22, 0
      %p43 = por %p41, %p42
      %p44 = scmp.ne.s32.totalorder %s30, %s31
      %p45 = scmp.eq.s32.totalorder %s23, 1
      %p46 = por %p44, %p45
      %p48 = scmp.ne.s32.totalorder %s31, %s47
      %p49 = scmp.eq.s32.totalorder %s23, 0
      %p50 = por %p48, %p49
      %s52 = sadd.s32 %s51, 1
      %p55 = scmp.eq.s32.totalorder %s17, 1
      %p56 = scmp.ne.s32.totalorder %s51, %s53
      %p57 = scmp.eq.s32.totalorder %s17, 0
      %p58 = por %p56, %p57
      %p59 = scmp.ne.s32.totalorder %s51, %s53
      %p60 = scmp.eq.s32.totalorder %s22, 1
      %p61 = por %p59, %p60
      %p62 = scmp.ne.s32.totalorder %s53, %s54
      %p63 = scmp.eq.s32.totalorder %s22, 0
      %p64 = por %p62, %p63
      %p65 = scmp.ne.s32.totalorder %s53, %s54
      %p66 = scmp.eq.s32.totalorder %s23, 1
      %p67 = por %p65, %p66
      %p69 = scmp.ne.s32.totalorder %s54, %s68
      %p70 = scmp.eq.s32.totalorder %s23, 0
      %p71 = por %p69, %p70
      %s73 = sadd.s32 %s72, 1
      %p76 = scmp.eq.s32.totalorder %s17, 1
      %p77 = scmp.ne.s32.totalorder %s72, %s74
      %p78 = scmp.eq.s32.totalorder %s17, 0
      %p79 = por %p77, %p78
      %p80 = scmp.ne.s32.totalorder %s72, %s74
      %p81 = scmp.eq.s32.totalorder %s22, 1
      %p82 = por %p80, %p81
      %p83 = scmp.ne.s32.totalorder %s74, %s75
      %p84 = scmp.eq.s32.totalorder %s22, 0
      %p85 = por %p83, %p84
      %p86 = scmp.ne.s32.totalorder %s74, %s75
      %p87 = scmp.eq.s32.totalorder %s23, 1
      %p88 = por %p86, %p87
      %p90 = scmp.ne.s32.totalorder %s75, %s89
      %p91 = scmp.eq.s32.totalorder %s23, 0
      %p92 = por %p90, %p91
      %s94 = sadd.s32 %s93, 1
      %p97 = scmp.eq.s32.totalorder %s17, 1
      %p98 = scmp.ne.s32.totalorder %s93, %s95
      %p99 = scmp.eq.s32.totalorder %s17, 0
      %p100 = por %p98, %p99
      %p101 = scmp.ne.s32.totalorder %s93, %s95
      %p102 = scmp.eq.s32.totalorder %s22, 1
      %p103 = por %p101, %p102
      %p104 = scmp.ne.s32.totalorder %s95, %s96
      %p105 = scmp.eq.s32.totalorder %s22, 0
      %p106 = por %p104, %p105
      %p107 = scmp.ne.s32.totalorder %s95, %s96
      %p108 = scmp.eq.s32.totalorder %s23, 1
      %p109 = por %p107, %p108
      %p111 = scmp.ne.s32.totalorder %s96, %s110
      %p112 = scmp.eq.s32.totalorder %s23, 0
      %p113 = por %p111, %p112
      %s115 = sadd.s32 %s114, 1
      %p118 = scmp.eq.s32.totalorder %s17, 1
      %p119 = scmp.ne.s32.totalorder %s114, %s116
      %p120 = scmp.eq.s32.totalorder %s17, 0
      %p121 = por %p119, %p120
      %p122 = scmp.ne.s32.totalorder %s114, %s116
      %p123 = scmp.eq.s32.totalorder %s22, 1
      %p124 = por %p122, %p123
      %p125 = scmp.ne.s32.totalorder %s116, %s117
      %p126 = scmp.eq.s32.totalorder %s22, 0
      %p127 = por %p125, %p126
      %p128 = scmp.ne.s32.totalorder %s116, %s117
      %p129 = scmp.eq.s32.totalorder %s23, 1
      %p130 = por %p128, %p129
      %p132 = scmp.ne.s32.totalorder %s117, %s131
      %p133 = scmp.eq.s32.totalorder %s23, 0
      %p134 = por %p132, %p133
      %s135 = ssub.s32 %s17, %s24
      %p136 = scmp.eq.s32.totalorder %s135, 0
      %s138 = sadd.s32 %s137, 1
      %s139 = scalar_select %p136, %s137, %s138
      %p142 = pneg %p136
      %p143 = scmp.eq.s32.totalorder %s17, 1
      %p144 = por %p142, %p143
      %p145 = scmp.ne.s32.totalorder %s137, %s140
      %p146 = scmp.eq.s32.totalorder %s17, 0
      %p147 = por %p145, %p146
      %p148 = scmp.ne.s32.totalorder %s137, %s140
      %p149 = scmp.eq.s32.totalorder %s22, 1
      %p150 = por %p148, %p149
      %p151 = scmp.ne.s32.totalorder %s140, %s141
      %p152 = scmp.eq.s32.totalorder %s22, 0
      %p153 = por %p151, %p152
      %p154 = scmp.ne.s32.totalorder %s140, %s141
      %p155 = scmp.eq.s32.totalorder %s23, 1
      %p156 = por %p154, %p155
      %p158 = scmp.ne.s32.totalorder %s141, %s157
      %p159 = scmp.eq.s32.totalorder %s23, 0
      %p160 = por %p158, %p159
      %p161 = scmp.le.s32.totalorder 1, %s17
      %p162 = scmp.lt.s32.totalorder %s17, 3
      %p163 = pnand %p161, %p162
      %p164 = pneg %p163
      // Predicated region
      $region9: #{tpu_custom_call.1} parent=5 // pred_check
        _
      $region10: #{tpu_custom_call.1} parent=5 // pred_check_branch
        %166 = sbr.rel (%p163) target = $region12
      $region11: #{tpu_custom_call.1} parent=5 // pred_region
        %s167 = ssub.s32 %s17, 1
        // Predicated region
        $region13: #{tpu_custom_call.1} parent=11 // pred_check
          %p168 = pneg %p64
        $region14: #{tpu_custom_call.1} parent=11 // pred_check_branch
          %170 = sbr.rel (%p168) target = $region16
        $region15: #{tpu_custom_call.1} parent=11 // pred_region
          _
        $region16: #{tpu_custom_call.1} parent=11 // pred_fallthru
          _
        // Predicated region
        $region17: #{tpu_custom_call.1} parent=11 // pred_check
          %p171 = pneg %p85
        $region18: #{tpu_custom_call.1} parent=11 // pred_check_branch
          %173 = sbr.rel (%p171) target = $region20
        $region19: #{tpu_custom_call.1} parent=11 // pred_region
          _
        $region20: #{tpu_custom_call.1} parent=11 // pred_fallthru
          _
        // Predicated region
        $region21: #{tpu_custom_call.1} parent=11 // pred_check
          %p174 = pneg %p106
        $region22: #{tpu_custom_call.1} parent=11 // pred_check_branch
          %176 = sbr.rel (%p174) target = $region24
        $region23: #{tpu_custom_call.1} parent=11 // pred_region
          _
        $region24: #{tpu_custom_call.1} parent=11 // pred_fallthru
          _
        // Predicated region
        $region25: #{tpu_custom_call.1} parent=11 // pred_check
          %p177 = pneg %p127
        $region26: #{tpu_custom_call.1} parent=11 // pred_check_branch
          %179 = sbr.rel (%p177) target = $region28
        $region27: #{tpu_custom_call.1} parent=11 // pred_region
          _
        $region28: #{tpu_custom_call.1} parent=11 // pred_fallthru
          _
      $region12: #{tpu_custom_call.1} parent=5 // pred_fallthru
        _
      %p180 = scmp.lt.s32.totalorder %s17, 2
      // Predicated region
      $region29: #{tpu_custom_call.1} parent=5 // pred_check
        %p181 = pneg %p180
      $region30: #{tpu_custom_call.1} parent=5 // pred_check_branch
        %183 = sbr.rel (%p181) target = $region32
      $region31: #{tpu_custom_call.1} parent=5 // pred_region
        // Predicated region
        $region33: #{tpu_custom_call.1} parent=31 // pred_check
          %p184 = pneg %p37
        $region34: #{tpu_custom_call.1} parent=31 // pred_check_branch
          %186 = sbr.rel (%p184) target = $region36
        $region35: #{tpu_custom_call.1} parent=31 // pred_region
          %s187 = sand.u32 %s27, 1
          %s188 = scalar_lea.sflag [#allocation3], %s187
          %s189 = sand.u32 %s27, 1
          %s190 = smul.addr %s189, 64
          %s191 = scalar_lea.vmem [#allocation2], %s190
          %s192 = smul.u32 2, %s17
          %s194 = ssub.s32 1024, 1024
          %195 = vsyncadd %s188, %s194
          %s196 = smul.addr %s192, 128
          %s197 = scalar_lea.hbm %s0, %s196
          %s198 = sshll.u32 %s191, 4
          %s199 = int_to_ptr.vmem [resolvable:$true] %s198
          %204 = dma.hbm_to_vmem [thread:$0]  %s197, 1024, %s199, %s188, 512, 256, 16
        $region36: #{tpu_custom_call.1} parent=31 // pred_fallthru
          _
      $region32: #{tpu_custom_call.1} parent=5 // pred_fallthru
        _
      %p205 = scmp.le.s32.totalorder 1, %s17
      %p206 = scmp.lt.s32.totalorder %s17, 3
      %p207 = pnand %p205, %p206
      %p208 = pneg %p207
      // Predicated region
      $region37: #{tpu_custom_call.1} parent=5 // pred_check
        _
      $region38: #{tpu_custom_call.1} parent=5 // pred_check_branch
        %210 = sbr.rel (%p207) target = $region40
      $region39: #{tpu_custom_call.1} parent=5 // pred_region
        %s211 = ssub.s32 %s17, 1
        %s212 = sand.u32 %s30, 1
        %s213 = scalar_lea.sflag [#allocation3], %s212
        %s214 = sand.u32 %s30, 1
        %s215 = smul.addr %s214, 64
        %s216 = scalar_lea.vmem [#allocation2], %s215
        // Predicated region
        $region41: #{tpu_custom_call.1} parent=39 // pred_check
          %p217 = pneg %p43
        $region42: #{tpu_custom_call.1} parent=39 // pred_check_branch
          %219 = sbr.rel (%p217) target = $region44
        $region43: #{tpu_custom_call.1} parent=39 // pred_region
          %220 = dma.done %s213, 1024
        $region44: #{tpu_custom_call.1} parent=39 // pred_fallthru
          _
        %s221 = sand.u32 %s30, 1
        %s222 = scalar_lea.sflag [#allocation3], %s221
        %s223 = sand.u32 %s30, 1
        %s224 = smul.addr %s223, 64
        %s225 = scalar_lea.vmem [#allocation2], %s224
        %p226 = pneg %p43
        %p227 = pneg %p40
        %p228 = pneg %p64
        %p229 = pneg %p61
        %p230 = pneg %p85
        %p231 = pneg %p82
        %p232 = pneg %p106
        %p233 = pneg %p103
        %p234 = pneg %p127
        %p235 = pneg %p124
        %p236 = pneg %p153
        %p237 = pneg %p150
        %s238 = sand.u32 %s140, 1
        %s239 = scalar_lea.sflag [#allocation4], %s238
        %s240 = sand.u32 %s140, 1
        %s241 = smul.addr %s240, 64
        %s242 = scalar_lea.vmem [#allocation5], %s241
        %s243 = smul.u32 2, %s22
        %s244 = smul.u32 2, %s22
        %v245 = vld [vmem:[%s216] sm:$0xff]
        %v246 = vld [vmem:[%s216 + $0x8] sm:$0xff]
        %v247 = vld [vmem:[%s216 + $0x10] sm:$0xff]
        %v248 = vld [vmem:[%s216 + $0x18] sm:$0xff]
        %v249 = vld [vmem:[%s216 + $0x20] sm:$0xff]
        %v250 = vld [vmem:[%s216 + $0x28] sm:$0xff]
        %v251 = vld [vmem:[%s216 + $0x30] sm:$0xff]
        %v252 = vld [vmem:[%s216 + $0x38] sm:$0xff]
        %v253 = vld [vmem:[%s1] sm:$0xff]
        %v254 = vld [vmem:[%s1 + $0x8] sm:$0xff]
        %v255 = vld [vmem:[%s1 + $0x10] sm:$0xff]
        %v256 = vld [vmem:[%s1 + $0x18] sm:$0xff]
        %v257 = vld [vmem:[%s2] sm:$0xff]
        %v258 = vld [vmem:[%s2 + $0x8] sm:$0xff]
        %v259 = vld [vmem:[%s2 + $0x10] sm:$0xff]
        %v260 = vld [vmem:[%s2 + $0x18] sm:$0xff]
        %262 = vset.pattern.permute.xlu0 0
        %263 = vperm.xlu0 %262, %v257
        %v264 = vpop.permute.xlu0 %263
        %267 = vset.pattern.permute.xlu0 0
        %268 = vperm.xlu0 %267, %v258
        %v269 = vpop.permute.xlu0 %268
        %272 = vset.pattern.permute.xlu0 0
        %273 = vperm.xlu0 %272, %v259
        %v274 = vpop.permute.xlu0 %273
        %277 = vset.pattern.permute.xlu0 0
        %278 = vperm.xlu0 %277, %v260
        %v279 = vpop.permute.xlu0 %278
        %vm281 = vcmask 261120
        %v283 = vsel %vm281, %v253, 0
        %v286 = vsel %vm281, %v254, 0
        %v289 = vsel %vm281, %v255, 0
        %v292 = vsel %vm281, %v256, 0
        %294 = vmatprep.subr.mxu0 %v246
        %295 = vmatpush1.msra.mxu0 %v245
        %296 = vmatprep.subr.mxu0 %v248
        %297 = vmatpush1.msra.mxu0 %v247
        %298 = vmatprep.subr.mxu0 %v250
        %299 = vmatpush1.msra.mxu0 %v249
        %300 = vmatprep.subr.mxu0 %v252
        %301 = vmatpush1.msra.mxu0 %v251
        %302 = vmatprep.subr.mxu0 0.0
        %303 = vmatpush1.msra.mxu0 0.0
        %304 = vmatprep.subr.mxu0 0.0
        %305 = vmatpush1.msra.mxu0 0.0
        %306 = vmatprep.subr.mxu0 0.0
        %307 = vmatpush1.msra.mxu0 0.0
        %308 = vmatprep.subr.mxu0 0.0
        %309 = vmatpush1.msra.mxu0 0.0
        %310 = vmatprep.subr.mxu0 0.0
        %311 = vmatpush1.msra.mxu0 0.0
        %312 = vmatprep.subr.mxu0 0.0
        %313 = vmatpush1.msra.mxu0 0.0
        %314 = vmatprep.subr.mxu0 0.0
        %315 = vmatpush1.msra.mxu0 0.0
        %316 = vmatprep.subr.mxu0 0.0
        %317 = vmatpush1.msra.mxu0 0.0
        %318 = vmatprep.subr.mxu0 0.0
        %319 = vmatpush1.msra.mxu0 0.0
        %320 = vmatprep.subr.mxu0 0.0
        %321 = vmatpush1.msra.mxu0 0.0
        %322 = vmatprep.subr.mxu0 0.0
        %323 = vmatpush1.msra.mxu0 0.0
        %324 = vmatprep.subr.mxu0 0.0
        %325 = vmatpush1.msra.mxu0 0.0
        %326 = vmatprep.subr.mxu0 0.0
        %327 = vmatpush1.msra.mxu0 0.0
        %328 = vmatprep.subr.mxu0 0.0
        %329 = vmatpush1.msra.mxu0 0.0
        %330 = vmatprep.subr.mxu0 0.0
        %331 = vmatpush1.msra.mxu0 0.0
        %332 = vmatprep.subr.mxu0 0.0
        %333 = vmatpush1.msra.mxu0 0.0
        %334 = vmatprep.subr.mxu0 0.0
        %335 = vmatpush1.msra.mxu0 0.0
        %336 = vmatprep.subr.mxu0 0.0
        %337 = vmatpush1.msra.mxu0 0.0
        %338 = vmatprep.subr.mxu0 0.0
        %339 = vmatpush1.msra.mxu0 0.0
        %340 = vmatprep.subr.mxu0 0.0
        %341 = vmatpush1.msra.mxu0 0.0
        %342 = vmatprep.subr.mxu0 0.0
        %343 = vmatpush1.msra.mxu0 0.0
        %344 = vmatprep.subr.mxu0 0.0
        %345 = vmatpush1.msra.mxu0 0.0
        %346 = vmatprep.subr.mxu0 0.0
        %347 = vmatpush1.msra.mxu0 0.0
        %348 = vmatprep.subr.mxu0 0.0
        %349 = vmatpush1.msra.mxu0 0.0
        %350 = vmatprep.subr.mxu0 0.0
        %351 = vmatpush1.msra.mxu0 0.0
        %352 = vmatprep.subr.mxu0 0.0
        %353 = vmatpush1.msra.mxu0 0.0
        %354 = vmatprep.subr.mxu0 0.0
        %355 = vmatpush1.msra.mxu0 0.0
        %356 = vmatprep.subr.mxu0 0.0
        %357 = vmatpush1.msra.mxu0 0.0
        %358 = vmatprep.mubr.f32.mxu0 0.0
        %359 = vmatmul.mubr.f32.gmra.mrb[0].mxu0 %v283
        %v360 = vpop.f32.mrb[0].mxu0
        %v361 = vadd.f32 %v264, %v360
        %v362 = vpop.f32.mrb[0].mxu0
        %v363 = vadd.f32 %v264, %v362
        %364 = vmatprep.mubr.f32.mxu0 0.0
        %365 = vmatmul.mubr.f32.gmra.mrb[0].mxu0 %v286
        %v366 = vpop.f32.mrb[0].mxu0
        %v367 = vadd.f32 %v269, %v366
        %v368 = vpop.f32.mrb[0].mxu0
        %v369 = vadd.f32 %v269, %v368
        %370 = vmatprep.mubr.f32.mxu0 0.0
        %371 = vmatmul.mubr.f32.gmra.mrb[0].mxu0 %v289
        %v372 = vpop.f32.mrb[0].mxu0
        %v373 = vadd.f32 %v274, %v372
        %v374 = vpop.f32.mrb[0].mxu0
        %v375 = vadd.f32 %v274, %v374
        %376 = vmatprep.mubr.f32.mxu0 0.0
        %377 = vmatmul.mubr.f32.gmra.mrb[0].mxu0 %v292
        %v378 = vpop.f32.mrb[0].mxu0
        %v379 = vadd.f32 %v279, %v378
        %v380 = vpop.f32.mrb[0].mxu0
        %v381 = vadd.f32 %v279, %v380
        %382 = vdwg.mxu0
        %vm383 = vcmp.gt.f32.partialorder %v361, 1.0
        %vm384 = vcmp.gt.f32.partialorder %v363, 1.0
        %vm385 = vcmp.gt.f32.partialorder %v367, 1.0
        %vm386 = vcmp.gt.f32.partialorder %v369, 1.0
        %vm387 = vcmp.gt.f32.partialorder %v373, 1.0
        %vm388 = vcmp.gt.f32.partialorder %v375, 1.0
        %vm389 = vcmp.gt.f32.partialorder %v379, 1.0
        %vm390 = vcmp.gt.f32.partialorder %v381, 1.0
        %v391 = vsel %vm383, 1, 0
        %v392 = vsel %vm384, 1, 0
        %v393 = vsel %vm385, 1, 0
        %v394 = vsel %vm386, 1, 0
        %v395 = vsel %vm387, 1, 0
        %v396 = vsel %vm388, 1, 0
        %v397 = vsel %vm389, 1, 0
        %v398 = vsel %vm390, 1, 0
        %v399 = vcvt.s32.f32 %v391
        %v400 = vcvt.s32.f32 %v392
        %v401 = vcvt.s32.f32 %v393
        %v402 = vcvt.s32.f32 %v394
        %v403 = vcvt.s32.f32 %v395
        %v404 = vcvt.s32.f32 %v396
        %v405 = vcvt.s32.f32 %v397
        %v406 = vcvt.s32.f32 %v398
        %v407 = vld [vmem:[%s3] sm:$0xff]
        %v408 = vld [vmem:[%s3 + $0x8] sm:$0xff]
        %v409 = vld [vmem:[%s3 + $0x10] sm:$0xff]
        %v410 = vld [vmem:[%s3 + $0x18] sm:$0xff]
        %v411 = vld [vmem:[%s4] sm:$0xff]
        %v412 = vld [vmem:[%s4 + $0x8] sm:$0xff]
        %v413 = vld [vmem:[%s4 + $0x10] sm:$0xff]
        %v414 = vld [vmem:[%s4 + $0x18] sm:$0xff]
        %416 = vset.pattern.permute.xlu0 0
        %417 = vperm.xlu0 %416, %v411
        %v418 = vpop.permute.xlu0 %417
        %421 = vset.pattern.permute.xlu0 0
        %422 = vperm.xlu0 %421, %v412
        %v423 = vpop.permute.xlu0 %422
        %426 = vset.pattern.permute.xlu0 0
        %427 = vperm.xlu0 %426, %v413
        %v428 = vpop.permute.xlu0 %427
        %431 = vset.pattern.permute.xlu0 0
        %432 = vperm.xlu0 %431, %v414
        %v433 = vpop.permute.xlu0 %432
        %v436 = vsel %vm281, %v407, 0
        %v439 = vsel %vm281, %v408, 0
        %v442 = vsel %vm281, %v409, 0
        %v445 = vsel %vm281, %v410, 0
        %447 = vmatprep.subr.mxu0 %v400
        %448 = vmatpush1.msra.mxu0 %v399
        %449 = vmatprep.subr.mxu0 %v402
        %450 = vmatpush1.msra.mxu0 %v401
        %451 = vmatprep.subr.mxu0 %v404
        %452 = vmatpush1.msra.mxu0 %v403
        %453 = vmatprep.subr.mxu0 %v406
        %454 = vmatpush1.msra.mxu0 %v405
        %455 = vmatprep.subr.mxu0 0.0
        %456 = vmatpush1.msra.mxu0 0.0
        %457 = vmatprep.subr.mxu0 0.0
        %458 = vmatpush1.msra.mxu0 0.0
        %459 = vmatprep.subr.mxu0 0.0
        %460 = vmatpush1.msra.mxu0 0.0
        %461 = vmatprep.subr.mxu0 0.0
        %462 = vmatpush1.msra.mxu0 0.0
        %463 = vmatprep.subr.mxu0 0.0
        %464 = vmatpush1.msra.mxu0 0.0
        %465 = vmatprep.subr.mxu0 0.0
        %466 = vmatpush1.msra.mxu0 0.0
        %467 = vmatprep.subr.mxu0 0.0
        %468 = vmatpush1.msra.mxu0 0.0
        %469 = vmatprep.subr.mxu0 0.0
        %470 = vmatpush1.msra.mxu0 0.0
        %471 = vmatprep.subr.mxu0 0.0
        %472 = vmatpush1.msra.mxu0 0.0
        %473 = vmatprep.subr.mxu0 0.0
        %474 = vmatpush1.msra.mxu0 0.0
        %475 = vmatprep.subr.mxu0 0.0
        %476 = vmatpush1.msra.mxu0 0.0
        %477 = vmatprep.subr.mxu0 0.0
        %478 = vmatpush1.msra.mxu0 0.0
        %479 = vmatprep.subr.mxu0 0.0
        %480 = vmatpush1.msra.mxu0 0.0
        %481 = vmatprep.subr.mxu0 0.0
        %482 = vmatpush1.msra.mxu0 0.0
        %483 = vmatprep.subr.mxu0 0.0
        %484 = vmatpush1.msra.mxu0 0.0
        %485 = vmatprep.subr.mxu0 0.0
        %486 = vmatpush1.msra.mxu0 0.0
        %487 = vmatprep.subr.mxu0 0.0
        %488 = vmatpush1.msra.mxu0 0.0
        %489 = vmatprep.subr.mxu0 0.0
        %490 = vmatpush1.msra.mxu0 0.0
        %491 = vmatprep.subr.mxu0 0.0
        %492 = vmatpush1.msra.mxu0 0.0
        %493 = vmatprep.subr.mxu0 0.0
        %494 = vmatpush1.msra.mxu0 0.0
        %495 = vmatprep.subr.mxu0 0.0
        %496 = vmatpush1.msra.mxu0 0.0
        %497 = vmatprep.subr.mxu0 0.0
        %498 = vmatpush1.msra.mxu0 0.0
        %499 = vmatprep.subr.mxu0 0.0
        %500 = vmatpush1.msra.mxu0 0.0
        %501 = vmatprep.subr.mxu0 0.0
        %502 = vmatpush1.msra.mxu0 0.0
        %503 = vmatprep.subr.mxu0 0.0
        %504 = vmatpush1.msra.mxu0 0.0
        %505 = vmatprep.subr.mxu0 0.0
        %506 = vmatpush1.msra.mxu0 0.0
        %507 = vmatprep.subr.mxu0 0.0
        %508 = vmatpush1.msra.mxu0 0.0
        %509 = vmatprep.subr.mxu0 0.0
        %510 = vmatpush1.msra.mxu0 0.0
        %511 = vmatprep.mubr.f32.mxu0 0.0
        %512 = vmatmul.mubr.f32.gmra.mrb[0].mxu0 %v436
        %v513 = vpop.f32.mrb[0].mxu0
        %v514 = vadd.f32 %v418, %v513
        %v515 = vpop.f32.mrb[0].mxu0
        %v516 = vadd.f32 %v418, %v515
        %517 = vmatprep.mubr.f32.mxu0 0.0
        %518 = vmatmul.mubr.f32.gmra.mrb[0].mxu0 %v439
        %v519 = vpop.f32.mrb[0].mxu0
        %v520 = vadd.f32 %v423, %v519
        %v521 = vpop.f32.mrb[0].mxu0
        %v522 = vadd.f32 %v423, %v521
        %523 = vmatprep.mubr.f32.mxu0 0.0
        %524 = vmatmul.mubr.f32.gmra.mrb[0].mxu0 %v442
        %v525 = vpop.f32.mrb[0].mxu0
        %v526 = vadd.f32 %v428, %v525
        %v527 = vpop.f32.mrb[0].mxu0
        %v528 = vadd.f32 %v428, %v527
        %529 = vmatprep.mubr.f32.mxu0 0.0
        %530 = vmatmul.mubr.f32.gmra.mrb[0].mxu0 %v445
        %v531 = vpop.f32.mrb[0].mxu0
        %v532 = vadd.f32 %v433, %v531
        %v533 = vpop.f32.mrb[0].mxu0
        %v534 = vadd.f32 %v433, %v533
        %535 = vdwg.mxu0
        %vm536 = vcmp.gt.f32.partialorder %v514, 1.0
        %vm537 = vcmp.gt.f32.partialorder %v516, 1.0
        %vm538 = vcmp.gt.f32.partialorder %v520, 1.0
        %vm539 = vcmp.gt.f32.partialorder %v522, 1.0
        %vm540 = vcmp.gt.f32.partialorder %v526, 1.0
        %vm541 = vcmp.gt.f32.partialorder %v528, 1.0
        %vm542 = vcmp.gt.f32.partialorder %v532, 1.0
        %vm543 = vcmp.gt.f32.partialorder %v534, 1.0
        %v544 = vsel %vm536, 1, 0
        %v545 = vsel %vm537, 1, 0
        %v546 = vsel %vm538, 1, 0
        %v547 = vsel %vm539, 1, 0
        %v548 = vsel %vm540, 1, 0
        %v549 = vsel %vm541, 1, 0
        %v550 = vsel %vm542, 1, 0
        %v551 = vsel %vm543, 1, 0
        %v552 = vcvt.s32.f32 %v544
        %v553 = vcvt.s32.f32 %v545
        %v554 = vcvt.s32.f32 %v546
        %v555 = vcvt.s32.f32 %v547
        %v556 = vcvt.s32.f32 %v548
        %v557 = vcvt.s32.f32 %v549
        %v558 = vcvt.s32.f32 %v550
        %v559 = vcvt.s32.f32 %v551
        %560 = vst [vmem:[%s242] sm:$0xff] %v552
        %561 = vst [vmem:[%s242 + $0x8] sm:$0xff] %v553
        %562 = vst [vmem:[%s242 + $0x10] sm:$0xff] %v554
        %563 = vst [vmem:[%s242 + $0x18] sm:$0xff] %v555
        %564 = vst [vmem:[%s242 + $0x20] sm:$0xff] %v556
        %565 = vst [vmem:[%s242 + $0x28] sm:$0xff] %v557
        %566 = vst [vmem:[%s242 + $0x30] sm:$0xff] %v558
        %567 = vst [vmem:[%s242 + $0x38] sm:$0xff] %v559
        %s568 = sand.u32 %s140, 1
        %s569 = scalar_lea.sflag [#allocation4], %s568
        %s570 = sand.u32 %s140, 1
        %s571 = smul.addr %s570, 64
        %s572 = scalar_lea.vmem [#allocation5], %s571
        // Predicated region
        $region45: #{tpu_custom_call.1} parent=39 // pred_check
          %p573 = pneg %p150
        $region46: #{tpu_custom_call.1} parent=39 // pred_check_branch
          %575 = sbr.rel (%p573) target = $region48
        $region47: #{tpu_custom_call.1} parent=39 // pred_region
          %s576 = smul.u32 2, %s22
          %s578 = ssub.s32 1024, 1024
          %579 = vsyncadd %s569, %s578
          %s580 = smul.addr %s576, 128
          %s581 = scalar_lea.hbm %s5, %s580
          %s582 = sshll.u32 %s572, 4
          %s583 = int_to_ptr.vmem [resolvable:$true] %s582
          %588 = dma.vmem_to_hbm [thread:$0]  %s583, 1024, %s581, %s569, 256, 512, 16
        $region48: #{tpu_custom_call.1} parent=39 // pred_fallthru
          _
      $region40: #{tpu_custom_call.1} parent=5 // pred_fallthru
        _
      %p589 = scmp.le.s32.totalorder 2, %s17
      // Predicated region
      $region49: #{tpu_custom_call.1} parent=5 // pred_check
        %p590 = pneg %p589
      $region50: #{tpu_custom_call.1} parent=5 // pred_check_branch
        %592 = sbr.rel (%p590) target = $region52
      $region51: #{tpu_custom_call.1} parent=5 // pred_region
        %s593 = ssub.s32 %s17, 2
        // Predicated region
        $region53: #{tpu_custom_call.1} parent=51 // pred_check
          %p594 = pneg %p156
        $region54: #{tpu_custom_call.1} parent=51 // pred_check_branch
          %596 = sbr.rel (%p594) target = $region56
        $region55: #{tpu_custom_call.1} parent=51 // pred_region
          %s597 = sand.u32 %s141, 1
          %s598 = scalar_lea.sflag [#allocation4], %s597
          %s599 = sand.u32 %s141, 1
          %s600 = smul.addr %s599, 64
          %s601 = scalar_lea.vmem [#allocation5], %s600
          %602 = dma.done %s598, 1024
        $region56: #{tpu_custom_call.1} parent=51 // pred_fallthru
          _
      $region52: #{tpu_custom_call.1} parent=5 // pred_fallthru
        _
    $region6: #{tpu_custom_call.1} parent=1 // loop_footer
      %s21 = sadd.s32 1, %s17
    $region7: #{tpu_custom_call.1} parent=1 // loop_footer_branch
      %16 = sbr.rel target = $region3
    $region8: #{tpu_custom_call.1} parent=1 // loop_exit
      _
    %603 = vsyncpa [#allocation3], 1
    %s604 = scalar_lea.sflag [#allocation3], 1
    %605 = vsyncpa %s604, 1
    %606 = vsyncpa [#allocation4], 1
    %s607 = scalar_lea.sflag [#allocation4], 1
    %608 = vsyncpa %s607, 1

</llo_original>
